<compile_context>
chip_gen: v6e
topology: v6e:2x2x1
jax: 0.10.0
libtpu: 0.0.40
codegen_flags: <defaults>
</compile_context>

<pallas_src>
import math

import jax
import jax.numpy as jnp
from jax.experimental import pallas as pl
from jax.experimental.pallas import tpu as pltpu

FEATURE_SIZE = 32
ATN_FEATURE_SIZE = 64
ATN_STABILIZER = math.sqrt(ATN_FEATURE_SIZE)
_SEG = 128  # lane-tile width; each fused-weight segment is padded to this


def _gcn_attention_kernel(feat_ref, adj_ref, wqkv_ref, bias_ref, out_ref):
    # feat_ref: (Bt, N, F) f32
    # adj_ref : (Bt, N, N) f32   (raw adjacency, used as a mask only)
    # wqkv_ref: (F, 3*128) f32   [Wq/sqrt(A) | 0 | Wk | 0 | Wv | 0], 128-aligned
    # bias_ref: (1, F) f32       (resident)
    # out_ref : (Bt, N*F) f32    lane-dense output block
    bt, n, f = feat_ref.shape

    x2d = feat_ref[...].reshape(bt * n, f)            # leading-dim merge (free)

    # Single fused projection matmul; the attention scale is pre-folded into Wq.
    proj = jnp.dot(x2d, wqkv_ref[...],
                   preferred_element_type=jnp.float32)  # (Bt*N, 3*128)

    # 128-lane-aligned slices. Padded columns are exactly zero, so contracting
    # q/k over the full 128 lanes below is exact.
    q = proj[:, 0:_SEG].reshape(bt, n, _SEG)
    k = proj[:, _SEG:2 * _SEG].reshape(bt, n, _SEG)
    v = jnp.tanh(proj[:, 2 * _SEG:2 * _SEG + f]).reshape(bt, n, f)

    # Batched scores, A-contraction done directly (no materialized transpose).
    scores = jnp.einsum("bqa,bka->bqk", q, k,
                        preferred_element_type=jnp.float32)   # (Bt, N, N)

    # One masking select. For any row with >= 1 neighbor, masked entries sit at
    # ~-1e30 so exp(masked - row_max) underflows to exactly 0; the max entry
    # always contributes exp(0)=1, so denom >= 1 and needs no guard.
    neg_inf = jnp.float32(-1e30)
    masked = jnp.where(adj_ref[...] != 0.0, scores, neg_inf)
    row_max = jnp.max(masked, axis=-1, keepdims=True)          # (Bt, N, 1)
    exp_s = jnp.exp(masked - row_max)
    denom = jnp.sum(exp_s, axis=-1, keepdims=True)             # >= 1

    # EUP reciprocal + one Newton-Raphson step (~f32-exact, off the VALU path).
    inv = pl.reciprocal(denom, approx=True)
    inv = inv * (2.0 - denom * inv)
    attn_w = exp_s * inv                                       # (Bt, N, N)

    out = jnp.einsum("bqk,bkf->bqf", attn_w, v,
                     preferred_element_type=jnp.float32)       # (Bt, N, F)

    # Isolated nodes: the whole row stayed ~-1e30, so row_max flags them; zero
    # those rows before the bias add (matches the PyTorch `continue`).
    connected = row_max > jnp.float32(-1e20)                   # (Bt, N, 1)
    out = jnp.where(connected, out, 0.0)

    # Lane-dense store: node i goes to lane window [i*F, (i+1)*F) of the
    # (Bt, N*F) block, so the HBM writeback DMA covers full 128-lane tiles.
    bias = bias_ref[...]                                       # (1, F)
    for i in range(n):                                         # static unroll
        out_ref[:, i * f:(i + 1) * f] = out[:, i, :] + bias


def _tpu_generation():
    """Best-effort TPU generation (5 / 6 / 7); defaults to 6-style choices."""
    try:
        kind = jax.devices()[0].device_kind.lower()
    except Exception:  # pragma: no cover - defensive
        return 6
    if "v5" in kind:
        return 5
    if "v7" in kind:
        return 7
    return 6


def _pick_bt(batch, n, gen):
    """Batches folded per grid step.

    Targets ~128 MXU rows on v5e, ~256 on v6e/v7x, requires bt | batch, and
    keeps the lane-dense (bt, N*F) output block layout-legal (bt == batch or
    bt % 8 == 0).  On v7x, prefer >= 2 grid steps (2 TensorCores) when a legal
    smaller bt exists.
    """
    target_rows = 128 if gen == 5 else 256

    def ok(c):
        return batch % c == 0 and (c == batch or c % 8 == 0)

    bt = max(1, min(batch, target_rows // max(n, 1)))
    while bt > 1 and not ok(bt):
        bt -= 1
    if not ok(bt):
        bt = batch                       # always legal fallback
    if gen == 7 and bt == batch and batch >= 2:
        half = batch // 2
        if half * 2 == batch and ok(half):
            bt = half                    # ensure the parallel axis spans both TCs
    return bt


def graph_convolution_attention(features, adj, wq, wk, wv, bias):
    B, N, F = features.shape
    A = wq.shape[1]
    assert A <= _SEG and F <= _SEG, "padding scheme assumes A, F <= 128"

    gen = _tpu_generation()

    # Fused projection weight, each segment starting on a 128-lane boundary.
    # The 1/sqrt(A) stabilizer is folded into Wq (one-time host prep).
    wqkv = jnp.zeros((F, 3 * _SEG), jnp.float32)
    wqkv = wqkv.at[:, 0:A].set(wq.astype(jnp.float32) / ATN_STABILIZER)
    wqkv = wqkv.at[:, _SEG:_SEG + A].set(wk.astype(jnp.float32))
    wqkv = wqkv.at[:, 2 * _SEG:2 * _SEG + F].set(wv.astype(jnp.float32))
    bias2d = bias.reshape(1, F).astype(jnp.float32)
    adj_f32 = adj.astype(jnp.float32)    # mask-only; no int8 repack at small N

    bt = _pick_bt(B, N, gen)             # B=2, N=8 -> bt=2, grid=(1,)
    grid = (B // bt,)
    vmem_limit = (48 << 20) if gen == 7 else (64 << 20)

    out2d = pl.pallas_call(
        _gcn_attention_kernel,
        out_shape=jax.ShapeDtypeStruct((B, N * F), jnp.float32),
        grid_spec=pltpu.PrefetchScalarGridSpec(
            num_scalar_prefetch=0,
            grid=grid,
            in_specs=[
                pl.BlockSpec((bt, N, F), lambda g: (g, 0, 0)),      # features
                pl.BlockSpec((bt, N, N), lambda g: (g, 0, 0)),      # adjacency
                pl.BlockSpec((F, 3 * _SEG), lambda g: (0, 0)),      # fused Wqkv (resident)
                pl.BlockSpec((1, F), lambda g: (0, 0)),             # bias (resident)
            ],
            out_specs=pl.BlockSpec((bt, N * F), lambda g: (g, 0)),  # lane-dense
        ),
        compiler_params=pltpu.CompilerParams(
            dimension_semantics=("parallel",),
            vmem_limit_bytes=vmem_limit,
        ),
    )(features.astype(jnp.float32), adj_f32, wqkv, bias2d)

    return out2d.reshape(B, N, F)


def reference_jax(features, adj, wq, wk, wv, bias):
    """Pure-JAX reference mirroring the PyTorch loop semantics."""
    q = features @ wq
    k = features @ wk
    v = jnp.tanh(features @ wv)
    scores = jnp.einsum("bia,bja->bij", q, k) / ATN_STABILIZER
    mask = adj != 0
    masked = jnp.where(mask, scores, -1e30)
    m = jnp.max(masked, axis=-1, keepdims=True)
    e = jnp.where(mask, jnp.exp(masked - m), 0.0)
    d = jnp.sum(e, axis=-1, keepdims=True)
    w = e / jnp.where(d == 0.0, 1.0, d)
    out = jnp.einsum("bij,bjf->bif", w, v)
    # NOTE: torch skips a row when sum(adj[b,i]) == 0; for non-negative
    # adjacency that is identical to "no nonzero neighbor", which is what the
    # kernel (and this reference) gate on.
    has_nb = jnp.any(adj != 0, axis=-1, keepdims=True)
    out = jnp.where(has_nb, out, 0.0)
    return out + bias


if __name__ == "__main__":
    B, N, F, A = 2, 8, FEATURE_SIZE, ATN_FEATURE_SIZE

    key = jax.random.PRNGKey(0)
    k_feat, k_adj, k_w, k_b, k_q, k_k, k_v = jax.random.split(key, 7)

    # Deterministic parameter init (shapes match the PyTorch module).
    stdv = 1.0 / math.sqrt(F)
    weight = jax.random.uniform(k_w, (F, F), jnp.float32, -stdv, stdv)  # unused on attention path
    bias = jax.random.uniform(k_b, (F,), jnp.float32, -stdv, stdv)
    # nn.Linear weights (stored transposed vs torch: here [in, out]).
    lim = 1.0 / math.sqrt(F)
    wq = jax.random.uniform(k_q, (F, A), jnp.float32, -lim, lim)
    wk = jax.random.uniform(k_k, (F, A), jnp.float32, -lim, lim)
    wv = jax.random.uniform(k_v, (F, F), jnp.float32, -lim, lim)

    features = jax.random.normal(k_feat, (B, N, F), jnp.float32)
    adj = (jax.random.uniform(k_adj, (B, N, N)) > 0.5).astype(jnp.float32)
    adj = adj.at[0, 3, :].set(0.0)   # isolated node -> exercises the zero-row path

    out = graph_convolution_attention(features, adj, wq, wk, wv, bias)
    out = jax.block_until_ready(out)

    ref = reference_jax(features, adj, wq, wk, wv, bias)
    assert out.shape == (B, N, F)
    assert jnp.allclose(out, ref, atol=2e-5, rtol=2e-5), "mismatch vs reference"

    print("KERNEL_OK")
</pallas_src>

<mosaic_0001>
module attributes {stable_mosaic.version = 11 : i64} {
  func.func @_gcn_attention_kernel(%arg0: i32, %arg1: memref<2x8x32xf32, #tpu.memory_space<vmem>>, %arg2: memref<2x8x8xf32, #tpu.memory_space<vmem>>, %arg3: memref<32x384xf32, #tpu.memory_space<vmem>>, %arg4: memref<1x32xf32, #tpu.memory_space<vmem>>, %arg5: memref<2x256xf32, #tpu.memory_space<vmem>>) attributes {dimension_semantics = [#tpu.dimension_semantics<parallel>], iteration_bounds = array<i64: 1>, scalar_prefetch = 0 : i64, scratch_operands = 0 : i64, tpu.core_type = #tpu.core_type<tc>, window_params = [{transform_indices = @transform_0, window_bounds = array<i64: 2, 8, 32>}, {transform_indices = @transform_1, window_bounds = array<i64: 2, 8, 8>}, {pipeline_mode = #tpu.pipeline_mode<synchronous>, transform_indices = @transform_2, window_bounds = array<i64: 32, 384>}, {pipeline_mode = #tpu.pipeline_mode<synchronous>, transform_indices = @transform_3, window_bounds = array<i64: 1, 32>}, {transform_indices = @transform_4, window_bounds = array<i64: 2, 256>}]} {
    %c0 = arith.constant 0 : index
    %c0_0 = arith.constant 0 : index
    %c0_1 = arith.constant 0 : index
    %0 = vector.load %arg1[%c0, %c0_0, %c0_1] : memref<2x8x32xf32, #tpu.memory_space<vmem>>, vector<2x8x32xf32>
    %1 = vector.shape_cast %0 : vector<2x8x32xf32> to vector<16x32xf32>
    %c0_2 = arith.constant 0 : index
    %c0_3 = arith.constant 0 : index
    %2 = vector.load %arg3[%c0_2, %c0_3] : memref<32x384xf32, #tpu.memory_space<vmem>>, vector<32x384xf32>
    %cst = arith.constant dense<0.000000e+00> : vector<16x384xf32>
    %3 = tpu.matmul %1, %2, %cst {dimension_numbers = #tpu.dot_dimension_numbers<[1], [0], [0], [1], [0, 0, 1, 1], [], []>} : vector<16x32xf32>, vector<32x384xf32>, vector<16x384xf32> -> vector<16x384xf32>
    %4 = vector.extract_strided_slice %3 {offsets = [0, 0], sizes = [16, 128], strides = [1, 1]} : vector<16x384xf32> to vector<16x128xf32>
    %5 = vector.shape_cast %4 : vector<16x128xf32> to vector<2x8x128xf32>
    %6 = vector.extract_strided_slice %3 {offsets = [0, 128], sizes = [16, 128], strides = [1, 1]} : vector<16x384xf32> to vector<16x128xf32>
    %7 = vector.shape_cast %6 : vector<16x128xf32> to vector<2x8x128xf32>
    %8 = vector.extract_strided_slice %3 {offsets = [0, 256], sizes = [16, 32], strides = [1, 1]} : vector<16x384xf32> to vector<16x32xf32>
    %9 = math.tanh %8 : vector<16x32xf32>
    %10 = vector.shape_cast %9 : vector<16x32xf32> to vector<2x8x32xf32>
    "tpu.trace_start"() <{level = 10 : i32, message = "bqa,bka->bqk"}> : () -> ()
    %cst_4 = arith.constant dense<0.000000e+00> : vector<2x8x8xf32>
    %11 = tpu.matmul %5, %7, %cst_4 {dimension_numbers = #tpu.dot_dimension_numbers<[2], [2], [1], [1], [0, 0, 0, 1, 1, 1], [0], [0]>} : vector<2x8x128xf32>, vector<2x8x128xf32>, vector<2x8x8xf32> -> vector<2x8x8xf32>
    "tpu.trace_stop"() : () -> ()
    %c0_5 = arith.constant 0 : index
    %c0_6 = arith.constant 0 : index
    %c0_7 = arith.constant 0 : index
    %12 = vector.load %arg2[%c0_5, %c0_6, %c0_7] : memref<2x8x8xf32, #tpu.memory_space<vmem>>, vector<2x8x8xf32>
    %cst_8 = arith.constant 0.000000e+00 : f32
    %13 = vector.broadcast %cst_8 : f32 to vector<2x8x8xf32>
    %14 = arith.cmpf one, %12, %13 : vector<2x8x8xf32>
    %cst_9 = arith.constant -1.000000e+30 : f32
    %15 = vector.broadcast %cst_9 : f32 to vector<2x8x8xf32>
    %16 = arith.select %14, %11, %15 : vector<2x8x8xi1>, vector<2x8x8xf32>
    %cst_10 = arith.constant dense<0xFF800000> : vector<2x8xf32>
    %17 = vector.multi_reduction <maximumf>, %16, %cst_10 [2] : vector<2x8x8xf32> to vector<2x8xf32>
    %18 = vector.shape_cast %17 : vector<2x8xf32> to vector<2x8x1xf32>
    %19 = vector.broadcast %18 : vector<2x8x1xf32> to vector<2x8x8xf32>
    %20 = arith.subf %16, %19 : vector<2x8x8xf32>
    %21 = math.exp %20 : vector<2x8x8xf32>
    %cst_11 = arith.constant dense<0.000000e+00> : vector<2x8xf32>
    %22 = vector.multi_reduction <add>, %21, %cst_11 [2] : vector<2x8x8xf32> to vector<2x8xf32>
    %23 = vector.shape_cast %22 : vector<2x8xf32> to vector<2x8x1xf32>
    %24 = tpu.reciprocal %23 {approx = true} : vector<2x8x1xf32> -> vector<2x8x1xf32>
    %25 = arith.mulf %23, %24 : vector<2x8x1xf32>
    %cst_12 = arith.constant 2.000000e+00 : f32
    %26 = vector.broadcast %cst_12 : f32 to vector<2x8x1xf32>
    %27 = arith.subf %26, %25 : vector<2x8x1xf32>
    %28 = arith.mulf %24, %27 : vector<2x8x1xf32>
    %29 = vector.broadcast %28 : vector<2x8x1xf32> to vector<2x8x8xf32>
    %30 = arith.mulf %21, %29 : vector<2x8x8xf32>
    "tpu.trace_start"() <{level = 10 : i32, message = "bqk,bkf->bqf"}> : () -> ()
    %cst_13 = arith.constant dense<0.000000e+00> : vector<2x8x32xf32>
    %31 = tpu.matmul %30, %10, %cst_13 {dimension_numbers = #tpu.dot_dimension_numbers<[2], [1], [1], [2], [0, 0, 0, 1, 1, 2], [0], [0]>} : vector<2x8x8xf32>, vector<2x8x32xf32>, vector<2x8x32xf32> -> vector<2x8x32xf32>
    %cst_14 = arith.constant -1.000000e+20 : f32
    "tpu.trace_stop"() : () -> ()
    %32 = vector.broadcast %cst_14 : f32 to vector<2x8x1xf32>
    %33 = arith.cmpf ogt, %18, %32 : vector<2x8x1xf32>
    %cst_15 = arith.constant 0.000000e+00 : f32
    %34 = vector.shape_cast %33 : vector<2x8x1xi1> to vector<2x8x1xi1>
    %35 = vector.broadcast %34 : vector<2x8x1xi1> to vector<2x8x32xi1>
    %36 = vector.broadcast %cst_15 : f32 to vector<2x8x32xf32>
    %37 = arith.select %35, %31, %36 : vector<2x8x32xi1>, vector<2x8x32xf32>
    %c0_16 = arith.constant 0 : index
    %c0_17 = arith.constant 0 : index
    %38 = vector.load %arg4[%c0_16, %c0_17] : memref<1x32xf32, #tpu.memory_space<vmem>>, vector<1x32xf32>
    %39 = vector.extract_strided_slice %37 {offsets = [0, 0, 0], sizes = [2, 1, 32], strides = [1, 1, 1]} : vector<2x8x32xf32> to vector<2x1x32xf32>
    %40 = vector.shape_cast %39 : vector<2x1x32xf32> to vector<2x32xf32>
    %41 = vector.broadcast %38 : vector<1x32xf32> to vector<2x32xf32>
    %42 = arith.addf %40, %41 : vector<2x32xf32>
    %c0_18 = arith.constant 0 : index
    %c0_19 = arith.constant 0 : index
    %43 = vector.load %arg5[%c0_18, %c0_19] : memref<2x256xf32, #tpu.memory_space<vmem>>, vector<2x32xf32>
    tpu.vector_store %arg5[%c0_18, %c0_19], %42 {strides = array<i32>} : memref<2x256xf32, #tpu.memory_space<vmem>>, vector<2x32xf32>,
    %44 = vector.extract_strided_slice %37 {offsets = [0, 1, 0], sizes = [2, 1, 32], strides = [1, 1, 1]} : vector<2x8x32xf32> to vector<2x1x32xf32>
    %45 = vector.shape_cast %44 : vector<2x1x32xf32> to vector<2x32xf32>
    %46 = vector.broadcast %38 : vector<1x32xf32> to vector<2x32xf32>
    %47 = arith.addf %45, %46 : vector<2x32xf32>
    %c0_20 = arith.constant 0 : index
    %c32 = arith.constant 32 : index
    %48 = vector.load %arg5[%c0_20, %c32] : memref<2x256xf32, #tpu.memory_space<vmem>>, vector<2x32xf32>
    tpu.vector_store %arg5[%c0_20, %c32], %47 {strides = array<i32>} : memref<2x256xf32, #tpu.memory_space<vmem>>, vector<2x32xf32>,
    %49 = vector.extract_strided_slice %37 {offsets = [0, 2, 0], sizes = [2, 1, 32], strides = [1, 1, 1]} : vector<2x8x32xf32> to vector<2x1x32xf32>
    %50 = vector.shape_cast %49 : vector<2x1x32xf32> to vector<2x32xf32>
    %51 = vector.broadcast %38 : vector<1x32xf32> to vector<2x32xf32>
    %52 = arith.addf %50, %51 : vector<2x32xf32>
    %c0_21 = arith.constant 0 : index
    %c64 = arith.constant 64 : index
    %53 = vector.load %arg5[%c0_21, %c64] : memref<2x256xf32, #tpu.memory_space<vmem>>, vector<2x32xf32>
    tpu.vector_store %arg5[%c0_21, %c64], %52 {strides = array<i32>} : memref<2x256xf32, #tpu.memory_space<vmem>>, vector<2x32xf32>,
    %54 = vector.extract_strided_slice %37 {offsets = [0, 3, 0], sizes = [2, 1, 32], strides = [1, 1, 1]} : vector<2x8x32xf32> to vector<2x1x32xf32>
    %55 = vector.shape_cast %54 : vector<2x1x32xf32> to vector<2x32xf32>
    %56 = vector.broadcast %38 : vector<1x32xf32> to vector<2x32xf32>
    %57 = arith.addf %55, %56 : vector<2x32xf32>
    %c0_22 = arith.constant 0 : index
    %c96 = arith.constant 96 : index
    %58 = vector.load %arg5[%c0_22, %c96] : memref<2x256xf32, #tpu.memory_space<vmem>>, vector<2x32xf32>
    tpu.vector_store %arg5[%c0_22, %c96], %57 {strides = array<i32>} : memref<2x256xf32, #tpu.memory_space<vmem>>, vector<2x32xf32>,
    %59 = vector.extract_strided_slice %37 {offsets = [0, 4, 0], sizes = [2, 1, 32], strides = [1, 1, 1]} : vector<2x8x32xf32> to vector<2x1x32xf32>
    %60 = vector.shape_cast %59 : vector<2x1x32xf32> to vector<2x32xf32>
    %61 = vector.broadcast %38 : vector<1x32xf32> to vector<2x32xf32>
    %62 = arith.addf %60, %61 : vector<2x32xf32>
    %c0_23 = arith.constant 0 : index
    %c128 = arith.constant 128 : index
    %63 = vector.load %arg5[%c0_23, %c128] : memref<2x256xf32, #tpu.memory_space<vmem>>, vector<2x32xf32>
    tpu.vector_store %arg5[%c0_23, %c128], %62 {strides = array<i32>} : memref<2x256xf32, #tpu.memory_space<vmem>>, vector<2x32xf32>,
    %64 = vector.extract_strided_slice %37 {offsets = [0, 5, 0], sizes = [2, 1, 32], strides = [1, 1, 1]} : vector<2x8x32xf32> to vector<2x1x32xf32>
    %65 = vector.shape_cast %64 : vector<2x1x32xf32> to vector<2x32xf32>
    %66 = vector.broadcast %38 : vector<1x32xf32> to vector<2x32xf32>
    %67 = arith.addf %65, %66 : vector<2x32xf32>
    %c0_24 = arith.constant 0 : index
    %c160 = arith.constant 160 : index
    %68 = vector.load %arg5[%c0_24, %c160] : memref<2x256xf32, #tpu.memory_space<vmem>>, vector<2x32xf32>
    tpu.vector_store %arg5[%c0_24, %c160], %67 {strides = array<i32>} : memref<2x256xf32, #tpu.memory_space<vmem>>, vector<2x32xf32>,
    %69 = vector.extract_strided_slice %37 {offsets = [0, 6, 0], sizes = [2, 1, 32], strides = [1, 1, 1]} : vector<2x8x32xf32> to vector<2x1x32xf32>
    %70 = vector.shape_cast %69 : vector<2x1x32xf32> to vector<2x32xf32>
    %71 = vector.broadcast %38 : vector<1x32xf32> to vector<2x32xf32>
    %72 = arith.addf %70, %71 : vector<2x32xf32>
    %c0_25 = arith.constant 0 : index
    %c192 = arith.constant 192 : index
    %73 = vector.load %arg5[%c0_25, %c192] : memref<2x256xf32, #tpu.memory_space<vmem>>, vector<2x32xf32>
    tpu.vector_store %arg5[%c0_25, %c192], %72 {strides = array<i32>} : memref<2x256xf32, #tpu.memory_space<vmem>>, vector<2x32xf32>,
    %74 = vector.extract_strided_slice %37 {offsets = [0, 7, 0], sizes = [2, 1, 32], strides = [1, 1, 1]} : vector<2x8x32xf32> to vector<2x1x32xf32>
    %75 = vector.shape_cast %74 : vector<2x1x32xf32> to vector<2x32xf32>
    %76 = vector.broadcast %38 : vector<1x32xf32> to vector<2x32xf32>
    %77 = arith.addf %75, %76 : vector<2x32xf32>
    %c0_26 = arith.constant 0 : index
    %c224 = arith.constant 224 : index
    %78 = vector.load %arg5[%c0_26, %c224] : memref<2x256xf32, #tpu.memory_space<vmem>>, vector<2x32xf32>
    tpu.vector_store %arg5[%c0_26, %c224], %77 {strides = array<i32>} : memref<2x256xf32, #tpu.memory_space<vmem>>, vector<2x32xf32>,
    return
  }
  func.func @transform_0(%arg0: i32) -> (i32, i32, i32) {
    %c0_i32 = arith.constant 0 : i32
    %c0_i32_0 = arith.constant 0 : i32
    %c0_i32_1 = arith.constant 0 : i32
    return %arg0, %c0_i32, %c0_i32_0 : i32, i32, i32
  }
  func.func @transform_1(%arg0: i32) -> (i32, i32, i32) {
    %c0_i32 = arith.constant 0 : i32
    %c0_i32_0 = arith.constant 0 : i32
    %c0_i32_1 = arith.constant 0 : i32
    return %arg0, %c0_i32, %c0_i32_0 : i32, i32, i32
  }
  func.func @transform_2(%arg0: i32) -> (i32, i32) {
    %c0_i32 = arith.constant 0 : i32
    %c0_i32_0 = arith.constant 0 : i32
    %c0_i32_1 = arith.constant 0 : i32
    return %c0_i32, %c0_i32_0 : i32, i32
  }
  func.func @transform_3(%arg0: i32) -> (i32, i32) {
    %c0_i32 = arith.constant 0 : i32
    %c0_i32_0 = arith.constant 0 : i32
    %c0_i32_1 = arith.constant 0 : i32
    return %c0_i32, %c0_i32_0 : i32, i32
  }
  func.func @transform_4(%arg0: i32) -> (i32, i32) {
    %c0_i32 = arith.constant 0 : i32
    %c0_i32_0 = arith.constant 0 : i32
    return %arg0, %c0_i32 : i32, i32
  }
}

</mosaic_0001>

<llo_original>
// kernel: tpu_custom_call.1
$region0: #{tpu_custom_call.1}
  #allocation0 [shape = 'u32[]', space=smem, size = 0x4, offset = 0x4, fixed_abs, tag = 'smem constant byte address 0x4 - core index']
  #allocation1 [shape = 'u32[144,128]{1,0:T(1,128)}', space=vmem, size = 0x12000, scoped, tag = 'internal scratch']
  %s0 = inlined_call_operand.hbm [shape: f32[2,8,32], index: 0, kind: input, shape index: {}]
  %s1 = inlined_call_operand.hbm [shape: f32[2,8,8], index: 1, kind: input, shape index: {}]
  %s2 = inlined_call_operand.hbm [shape: f32[32,384], index: 2, kind: input, shape index: {}]
  %s3 = inlined_call_operand.vmem [shape: f32[1,32], index: 3, kind: input, shape index: {}]
  %s4 = inlined_call_operand.hbm [shape: f32[2,256], index: 4, kind: output, shape index: {}]
  %s5 = sld [smem:[#allocation0]]
  $region38: #{tpu_custom_call.1} parent=0
    _
  %s7 = ssub.s32 1, %s5
  %s8 = scalar_select 0, %s7, %s5
  $region1: #{tpu_custom_call.1} parent=0
    #allocation2 [shape = 'u8[8192]{0}', space=vmem, size = 0x2000, scoped, tag = 'input window, operand 0, single buffered']
    #allocation3 [shape = 's32[1]{0}', space=sflag, size = 0x4, scoped, tag = 'scoped memory for tpu_custom_call.1']
    #allocation4 [shape = 's32[1]{0}', space=sflag, size = 0x4, scoped, tag = 'scoped memory for tpu_custom_call.1']
    #allocation5 [shape = 'u8[8192]{0}', space=vmem, size = 0x2000, scoped, tag = 'input window, operand 1, single buffered']
    #allocation6 [shape = 's32[1]{0}', space=sflag, size = 0x4, scoped, tag = 'scoped memory for tpu_custom_call.1']
    #allocation7 [shape = 'u8[49152]{0}', space=vmem, size = 0xc000, scoped, tag = 'input window, operand 2, single buffered']
    #allocation8 [shape = 'u8[2048]{0}', space=vmem, size = 0x800, scoped, tag = 'output window, operand 0, single buffered']
    %9 = vsyncpa [#allocation3], 0
    %10 = vsyncpa [#allocation6], 0
    %11 = vsyncpa [#allocation4], 0
    // Predicated region
    $region2: #{tpu_custom_call.1} parent=1 // pred_check
      _
    $region3: #{tpu_custom_call.1} parent=1 // pred_check_branch
      %13 = sbr.rel (0) target = $region5
    $region4: #{tpu_custom_call.1} parent=1 // pred_region
      %s15 = ssub.s32 256, 256
      %16 = vsyncadd [#allocation3], %s15
      %s17 = sshll.u32 [#allocation2], 4
      %s18 = int_to_ptr.vmem [resolvable:$true] %s17
      %23 = dma.hbm_to_vmem [thread:$0]  %s0, 256, %s18, [#allocation3], 128, 128, 8
    $region5: #{tpu_custom_call.1} parent=1 // pred_fallthru
      _
    // Predicated region
    $region6: #{tpu_custom_call.1} parent=1 // pred_check
      _
    $region7: #{tpu_custom_call.1} parent=1 // pred_check_branch
      %25 = sbr.rel (0) target = $region9
    $region8: #{tpu_custom_call.1} parent=1 // pred_region
      %s27 = ssub.s32 256, 256
      %28 = vsyncadd [#allocation6], %s27
      %s29 = sshll.u32 [#allocation5], 4
      %s30 = int_to_ptr.vmem [resolvable:$true] %s29
      %35 = dma.hbm_to_vmem [thread:$0]  %s1, 256, %s30, [#allocation6], 128, 128, 8
    $region9: #{tpu_custom_call.1} parent=1 // pred_fallthru
      _
    // Predicated region
    $region10: #{tpu_custom_call.1} parent=1 // pred_check
      _
    $region11: #{tpu_custom_call.1} parent=1 // pred_check_branch
      %37 = sbr.rel (0) target = $region13
    $region12: #{tpu_custom_call.1} parent=1 // pred_region
      %s39 = ssub.s32 1536, 1536
      %40 = vsyncadd [#allocation6], %s39
      %s41 = sshll.u32 [#allocation7], 4
      %s42 = int_to_ptr.vmem [resolvable:$true] %s41
      %47 = dma.hbm_to_vmem [thread:$0]  %s2, 1536, %s42, [#allocation6], 384, 384, 24
    $region13: #{tpu_custom_call.1} parent=1 // pred_fallthru
      _
    // Predicated region
    $region14: #{tpu_custom_call.1} parent=1 // pred_check
      _
    $region15: #{tpu_custom_call.1} parent=1 // pred_check_branch
      %49 = sbr.rel (0) target = $region17
    $region16: #{tpu_custom_call.1} parent=1 // pred_region
      _
    $region17: #{tpu_custom_call.1} parent=1 // pred_fallthru
      _
    // Predicated region
    $region18: #{tpu_custom_call.1} parent=1 // pred_check
      _
    $region19: #{tpu_custom_call.1} parent=1 // pred_check_branch
      %51 = sbr.rel (0) target = $region21
    $region20: #{tpu_custom_call.1} parent=1 // pred_region
      %52 = dma.done [#allocation3], 256
    $region21: #{tpu_custom_call.1} parent=1 // pred_fallthru
      _
    // Predicated region
    $region22: #{tpu_custom_call.1} parent=1 // pred_check
      _
    $region23: #{tpu_custom_call.1} parent=1 // pred_check_branch
      %54 = sbr.rel (0) target = $region25
    $region24: #{tpu_custom_call.1} parent=1 // pred_region
      %55 = dma.done [#allocation6], 256
    $region25: #{tpu_custom_call.1} parent=1 // pred_fallthru
      _
    // Predicated region
    $region26: #{tpu_custom_call.1} parent=1 // pred_check
      _
    $region27: #{tpu_custom_call.1} parent=1 // pred_check_branch
      %57 = sbr.rel (0) target = $region29
    $region28: #{tpu_custom_call.1} parent=1 // pred_region
      %58 = dma.done [#allocation6], 1536
    $region29: #{tpu_custom_call.1} parent=1 // pred_fallthru
      _
    %v59 = vld [vmem:[#allocation2] sm:$0xff]
    %v60 = vld [vmem:[#allocation2 + $0x8] sm:$0xff]
    %v61 = vld [vmem:[#allocation7] sm:$0xff]
    %v62 = vld [vmem:[#allocation7 + $0x8] sm:$0xff]
    %v63 = vld [vmem:[#allocation7 + $0x10] sm:$0xff]
    %v64 = vld [vmem:[#allocation7 + $0x18] sm:$0xff]
    %v65 = vld [vmem:[#allocation7 + $0x20] sm:$0xff]
    %v66 = vld [vmem:[#allocation7 + $0x28] sm:$0xff]
    %v67 = vld [vmem:[#allocation7 + $0x30] sm:$0xff]
    %v68 = vld [vmem:[#allocation7 + $0x38] sm:$0xff]
    %v69 = vld [vmem:[#allocation7 + $0x40] sm:$0xff]
    %v70 = vld [vmem:[#allocation7 + $0x48] sm:$0xff]
    %v71 = vld [vmem:[#allocation7 + $0x50] sm:$0xff]
    %v72 = vld [vmem:[#allocation7 + $0x58] sm:$0xff]
    %vm73 = vcmask 261120
    %v75 = vsel %vm73, %v59, 0
    %v78 = vsel %vm73, %v60, 0
    %80 = vmatprep.subr.mxu0 0.0
    %81 = vmatpush1.msra.mxu0 0.0
    %82 = vmatprep.subr.mxu0 0.0
    %83 = vmatpush1.msra.mxu0 0.0
    %84 = vmatprep.subr.mxu0 0.0
    %85 = vmatpush1.msra.mxu0 0.0
    %86 = vmatprep.subr.mxu0 0.0
    %87 = vmatpush1.msra.mxu0 0.0
    %88 = vmatprep.subr.mxu0 0.0
    %89 = vmatpush1.msra.mxu0 0.0
    %90 = vmatprep.subr.mxu0 0.0
    %91 = vmatpush1.msra.mxu0 0.0
    %92 = vmatprep.subr.mxu0 0.0
    %93 = vmatpush1.msra.mxu0 0.0
    %94 = vmatprep.subr.mxu0 0.0
    %95 = vmatpush1.msra.mxu0 0.0
    %96 = vmatprep.subr.mxu0 0.0
    %97 = vmatpush1.msra.mxu0 0.0
    %98 = vmatprep.subr.mxu0 0.0
    %99 = vmatpush1.msra.mxu0 0.0
    %100 = vmatprep.subr.mxu0 0.0
    %101 = vmatpush1.msra.mxu0 0.0
    %102 = vmatprep.subr.mxu0 0.0
    %103 = vmatpush1.msra.mxu0 0.0
    %104 = vmatprep.subr.mxu0 %v71
    %105 = vmatpush1.msra.mxu0 %v70
    %106 = vmatprep.subr.mxu0 %v68
    %107 = vmatpush1.msra.mxu0 %v67
    %108 = vmatprep.subr.mxu0 %v65
    %109 = vmatpush1.msra.mxu0 %v64
    %110 = vmatprep.subr.mxu0 %v62
    %111 = vmatpush1.msra.mxu0 %v61
    %112 = vmatprep.subr.mxu0 0.0
    %113 = vmatpush2.msra.mxu0 0.0
    %114 = vmatprep.subr.mxu0 0.0
    %115 = vmatpush2.msra.mxu0 0.0
    %116 = vmatprep.subr.mxu0 0.0
    %117 = vmatpush2.msra.mxu0 0.0
    %118 = vmatprep.subr.mxu0 0.0
    %119 = vmatpush2.msra.mxu0 0.0
    %120 = vmatprep.subr.mxu0 0.0
    %121 = vmatpush2.msra.mxu0 0.0
    %122 = vmatprep.subr.mxu0 0.0
    %123 = vmatpush2.msra.mxu0 0.0
    %124 = vmatprep.subr.mxu0 0.0
    %125 = vmatpush2.msra.mxu0 0.0
    %126 = vmatprep.subr.mxu0 0.0
    %127 = vmatpush2.msra.mxu0 0.0
    %128 = vmatprep.subr.mxu0 0.0
    %129 = vmatpush2.msra.mxu0 0.0
    %130 = vmatprep.subr.mxu0 0.0
    %131 = vmatpush2.msra.mxu0 0.0
    %132 = vmatprep.subr.mxu0 0.0
    %133 = vmatpush2.msra.mxu0 0.0
    %134 = vmatprep.subr.mxu0 0.0
    %135 = vmatpush2.msra.mxu0 0.0
    %136 = vmatprep.subr.mxu0 0.0
    %137 = vmatpush2.msra.mxu0 0.0
    %138 = vmatprep.subr.mxu0 0.0
    %139 = vmatpush2.msra.mxu0 0.0
    %140 = vmatprep.subr.mxu0 0.0
    %141 = vmatpush2.msra.mxu0 0.0
    %142 = vmatprep.subr.mxu0 0.0
    %143 = vmatpush2.msra.mxu0 0.0
    %144 = vmatprep.mubr.f32.mxu0 0.0
    %145 = vmatmul.mubr.f32.gmra.mxu0 %v75
    %v146 = vpop.f32.mrf.mxu0
    %v147 = vadd.f32 0.0, %v146
    %v148 = vpop.f32.mrf.mxu0
    %v149 = vadd.f32 0.0, %v148
    %150 = vmatprep.mubr.f32.mxu0 0.0
    %151 = vmatmul.mubr.f32.gmra.mxu0 %v78
    %v152 = vpop.f32.mrf.mxu0
    %v153 = vadd.f32 0.0, %v152
    %v154 = vpop.f32.mrf.mxu0
    %v155 = vadd.f32 0.0, %v154
    %156 = vdwg.mxu0
    %157 = vmatprep.subr.mxu0 0.0
    %158 = vmatpush1.msra.mxu0 0.0
    %159 = vmatprep.subr.mxu0 0.0
    %160 = vmatpush1.msra.mxu0 0.0
    %161 = vmatprep.subr.mxu0 0.0
    %162 = vmatpush1.msra.mxu0 0.0
    %163 = vmatprep.subr.mxu0 0.0
    %164 = vmatpush1.msra.mxu0 0.0
    %165 = vmatprep.subr.mxu0 0.0
    %166 = vmatpush1.msra.mxu0 0.0
    %167 = vmatprep.subr.mxu0 0.0
    %168 = vmatpush1.msra.mxu0 0.0
    %169 = vmatprep.subr.mxu0 0.0
    %170 = vmatpush1.msra.mxu0 0.0
    %171 = vmatprep.subr.mxu0 0.0
    %172 = vmatpush1.msra.mxu0 0.0
    %173 = vmatprep.subr.mxu0 0.0
    %174 = vmatpush1.msra.mxu0 0.0
    %175 = vmatprep.subr.mxu0 0.0
    %176 = vmatpush1.msra.mxu0 0.0
    %177 = vmatprep.subr.mxu0 0.0
    %178 = vmatpush1.msra.mxu0 0.0
    %179 = vmatprep.subr.mxu0 0.0
    %180 = vmatpush1.msra.mxu0 0.0
    %181 = vmatprep.subr.mxu0 0.0
    %182 = vmatpush1.msra.mxu0 %v72
    %183 = vmatprep.subr.mxu0 0.0
    %184 = vmatpush1.msra.mxu0 %v69
    %185 = vmatprep.subr.mxu0 0.0
    %186 = vmatpush1.msra.mxu0 %v66
    %187 = vmatprep.subr.mxu0 0.0
    %188 = vmatpush1.msra.mxu0 %v63
    %189 = vmatprep.subr.mxu0 0.0
    %190 = vmatpush2.msra.mxu0 0.0
    %191 = vmatprep.subr.mxu0 0.0
    %192 = vmatpush2.msra.mxu0 0.0
    %193 = vmatprep.subr.mxu0 0.0
    %194 = vmatpush2.msra.mxu0 0.0
    %195 = vmatprep.subr.mxu0 0.0
    %196 = vmatpush2.msra.mxu0 0.0
    %197 = vmatprep.subr.mxu0 0.0
    %198 = vmatpush2.msra.mxu0 0.0
    %199 = vmatprep.subr.mxu0 0.0
    %200 = vmatpush2.msra.mxu0 0.0
    %201 = vmatprep.subr.mxu0 0.0
    %202 = vmatpush2.msra.mxu0 0.0
    %203 = vmatprep.subr.mxu0 0.0
    %204 = vmatpush2.msra.mxu0 0.0
    %205 = vmatprep.subr.mxu0 0.0
    %206 = vmatpush2.msra.mxu0 0.0
    %207 = vmatprep.subr.mxu0 0.0
    %208 = vmatpush2.msra.mxu0 0.0
    %209 = vmatprep.subr.mxu0 0.0
    %210 = vmatpush2.msra.mxu0 0.0
    %211 = vmatprep.subr.mxu0 0.0
    %212 = vmatpush2.msra.mxu0 0.0
    %213 = vmatprep.subr.mxu0 0.0
    %214 = vmatpush2.msra.mxu0 0.0
    %215 = vmatprep.subr.mxu0 0.0
    %216 = vmatpush2.msra.mxu0 0.0
    %217 = vmatprep.subr.mxu0 0.0
    %218 = vmatpush2.msra.mxu0 0.0
    %219 = vmatprep.subr.mxu0 0.0
    %220 = vmatpush2.msra.mxu0 0.0
    %221 = vmatprep.mubr.f32.mxu0 0.0
    %222 = vmatmul.mubr.f32.gmra.mxu0 %v75
    %v223 = vpop.f32.mrf.mxu0
    %v224 = vadd.f32 0.0, %v223
    %v225 = vpop.f32.mrf.mxu0
    %226 = vmatprep.mubr.f32.mxu0 0.0
    %227 = vmatmul.mubr.f32.gmra.mxu0 %v78
    %v228 = vpop.f32.mrf.mxu0
    %v229 = vadd.f32 0.0, %v228
    %v230 = vpop.f32.mrf.mxu0
    %231 = vdwg.mxu0
    %v232 = vtanh.pop %v224
    %v233 = vtanh.pop %v229
    %234 = vmatprep.subr.mxu0 0.0
    %235 = vmatpush1.xpose.msra.mxu0 0.0
    %236 = vmatprep.subr.mxu0 0.0
    %237 = vmatpush1.xpose.msra.mxu0 0.0
    %238 = vmatprep.subr.mxu0 0.0
    %239 = vmatpush1.xpose.msra.mxu0 0.0
    %240 = vmatprep.subr.mxu0 0.0
    %241 = vmatpush1.xpose.msra.mxu0 0.0
    %242 = vmatprep.subr.mxu0 0.0
    %243 = vmatpush1.xpose.msra.mxu0 0.0
    %244 = vmatprep.subr.mxu0 0.0
    %245 = vmatpush1.xpose.msra.mxu0 0.0
    %246 = vmatprep.subr.mxu0 0.0
    %247 = vmatpush1.xpose.msra.mxu0 0.0
    %248 = vmatprep.subr.mxu0 0.0
    %249 = vmatpush1.xpose.msra.mxu0 0.0
    %250 = vmatprep.subr.mxu0 0.0
    %251 = vmatpush1.xpose.msra.mxu0 0.0
    %252 = vmatprep.subr.mxu0 0.0
    %253 = vmatpush1.xpose.msra.mxu0 0.0
    %254 = vmatprep.subr.mxu0 0.0
    %255 = vmatpush1.xpose.msra.mxu0 0.0
    %256 = vmatprep.subr.mxu0 0.0
    %257 = vmatpush1.xpose.msra.mxu0 0.0
    %258 = vmatprep.subr.mxu0 0.0
    %259 = vmatpush1.xpose.msra.mxu0 0.0
    %260 = vmatprep.subr.mxu0 0.0
    %261 = vmatpush1.xpose.msra.mxu0 0.0
    %262 = vmatprep.subr.mxu0 0.0
    %263 = vmatpush1.xpose.msra.mxu0 0.0
    %264 = vmatprep.subr.mxu0 0.0
    %265 = vmatpush1.xpose.msra.mxu0 %v149
    %266 = vmatprep.subr.mxu0 0.0
    %267 = vmatpush2.xpose.msra.mxu0 0.0
    %268 = vmatprep.subr.mxu0 0.0
    %269 = vmatpush2.xpose.msra.mxu0 0.0
    %270 = vmatprep.subr.mxu0 0.0
    %271 = vmatpush2.xpose.msra.mxu0 0.0
    %272 = vmatprep.subr.mxu0 0.0
    %273 = vmatpush2.xpose.msra.mxu0 0.0
    %274 = vmatprep.subr.mxu0 0.0
    %275 = vmatpush2.xpose.msra.mxu0 0.0
    %276 = vmatprep.subr.mxu0 0.0
    %277 = vmatpush2.xpose.msra.mxu0 0.0
    %278 = vmatprep.subr.mxu0 0.0
    %279 = vmatpush2.xpose.msra.mxu0 0.0
    %280 = vmatprep.subr.mxu0 0.0
    %281 = vmatpush2.xpose.msra.mxu0 0.0
    %282 = vmatprep.subr.mxu0 0.0
    %283 = vmatpush2.xpose.msra.mxu0 0.0
    %284 = vmatprep.subr.mxu0 0.0
    %285 = vmatpush2.xpose.msra.mxu0 0.0
    %286 = vmatprep.subr.mxu0 0.0
    %287 = vmatpush2.xpose.msra.mxu0 0.0
    %288 = vmatprep.subr.mxu0 0.0
    %289 = vmatpush2.xpose.msra.mxu0 0.0
    %290 = vmatprep.subr.mxu0 0.0
    %291 = vmatpush2.xpose.msra.mxu0 0.0
    %292 = vmatprep.subr.mxu0 0.0
    %293 = vmatpush2.xpose.msra.mxu0 0.0
    %294 = vmatprep.subr.mxu0 0.0
    %295 = vmatpush2.xpose.msra.mxu0 0.0
    %296 = vmatprep.subr.mxu0 0.0
    %297 = vmatpush2.xpose.msra.mxu0 0.0
    %298 = vmatprep.mubr.f32.mxu0 0.0
    %299 = vmatmul.mubr.f32.gmra.mxu0 %v147
    %v300 = vpop.f32.mrf.mxu0
    %v301 = vadd.f32 0.0, %v300
    %v302 = vpop.f32.mrf.mxu0
    %303 = vdwg.mxu0
    %304 = vmatprep.subr.mxu0 0.0
    %305 = vmatpush1.xpose.msra.mxu0 0.0
    %306 = vmatprep.subr.mxu0 0.0
    %307 = vmatpush1.xpose.msra.mxu0 0.0
    %308 = vmatprep.subr.mxu0 0.0
    %309 = vmatpush1.xpose.msra.mxu0 0.0
    %310 = vmatprep.subr.mxu0 0.0
    %311 = vmatpush1.xpose.msra.mxu0 0.0
    %312 = vmatprep.subr.mxu0 0.0
    %313 = vmatpush1.xpose.msra.mxu0 0.0
    %314 = vmatprep.subr.mxu0 0.0
    %315 = vmatpush1.xpose.msra.mxu0 0.0
    %316 = vmatprep.subr.mxu0 0.0
    %317 = vmatpush1.xpose.msra.mxu0 0.0
    %318 = vmatprep.subr.mxu0 0.0
    %319 = vmatpush1.xpose.msra.mxu0 0.0
    %320 = vmatprep.subr.mxu0 0.0
    %321 = vmatpush1.xpose.msra.mxu0 0.0
    %322 = vmatprep.subr.mxu0 0.0
    %323 = vmatpush1.xpose.msra.mxu0 0.0
    %324 = vmatprep.subr.mxu0 0.0
    %325 = vmatpush1.xpose.msra.mxu0 0.0
    %326 = vmatprep.subr.mxu0 0.0
    %327 = vmatpush1.xpose.msra.mxu0 0.0
    %328 = vmatprep.subr.mxu0 0.0
    %329 = vmatpush1.xpose.msra.mxu0 0.0
    %330 = vmatprep.subr.mxu0 0.0
    %331 = vmatpush1.xpose.msra.mxu0 0.0
    %332 = vmatprep.subr.mxu0 0.0
    %333 = vmatpush1.xpose.msra.mxu0 0.0
    %334 = vmatprep.subr.mxu0 0.0
    %335 = vmatpush1.xpose.msra.mxu0 %v155
    %336 = vmatprep.subr.mxu0 0.0
    %337 = vmatpush2.xpose.msra.mxu0 0.0
    %338 = vmatprep.subr.mxu0 0.0
    %339 = vmatpush2.xpose.msra.mxu0 0.0
    %340 = vmatprep.subr.mxu0 0.0
    %341 = vmatpush2.xpose.msra.mxu0 0.0
    %342 = vmatprep.subr.mxu0 0.0
    %343 = vmatpush2.xpose.msra.mxu0 0.0
    %344 = vmatprep.subr.mxu0 0.0
    %345 = vmatpush2.xpose.msra.mxu0 0.0
    %346 = vmatprep.subr.mxu0 0.0
    %347 = vmatpush2.xpose.msra.mxu0 0.0
    %348 = vmatprep.subr.mxu0 0.0
    %349 = vmatpush2.xpose.msra.mxu0 0.0
    %350 = vmatprep.subr.mxu0 0.0
    %351 = vmatpush2.xpose.msra.mxu0 0.0
    %352 = vmatprep.subr.mxu0 0.0
    %353 = vmatpush2.xpose.msra.mxu0 0.0
    %354 = vmatprep.subr.mxu0 0.0
    %355 = vmatpush2.xpose.msra.mxu0 0.0
    %356 = vmatprep.subr.mxu0 0.0
    %357 = vmatpush2.xpose.msra.mxu0 0.0
    %358 = vmatprep.subr.mxu0 0.0
    %359 = vmatpush2.xpose.msra.mxu0 0.0
    %360 = vmatprep.subr.mxu0 0.0
    %361 = vmatpush2.xpose.msra.mxu0 0.0
    %362 = vmatprep.subr.mxu0 0.0
    %363 = vmatpush2.xpose.msra.mxu0 0.0
    %364 = vmatprep.subr.mxu0 0.0
    %365 = vmatpush2.xpose.msra.mxu0 0.0
    %366 = vmatprep.subr.mxu0 0.0
    %367 = vmatpush2.xpose.msra.mxu0 0.0
    %368 = vmatprep.mubr.f32.mxu0 0.0
    %369 = vmatmul.mubr.f32.gmra.mxu0 %v153
    %v370 = vpop.f32.mrf.mxu0
    %v371 = vadd.f32 0.0, %v370
    %v372 = vpop.f32.mrf.mxu0
    %373 = vdwg.mxu0
    %v374 = vld [vmem:[#allocation5] sm:$0xff]
    %v375 = vld [vmem:[#allocation5 + $0x8] sm:$0xff]
    %vm376 = vcmp.ne.f32.partialorder %v374, 0.0
    %vm377 = vcmp.ne.f32.partialorder %v375, 0.0
    %v378 = vsel %vm376, %v301, -1e+30
    %v379 = vsel %vm377, %v371, -1e+30
    %vm380 = vcmask 64512
    %v381 = vsel %vm380, %v378, -inf
    %382 = vmax.xlane.f32.xlu0 %v381
    %v383 = vpop.xlane.xlu0 %382
    %v384 = vsel %vm380, %v379, -inf
    %385 = vmax.xlane.f32.xlu0 %v384
    %v386 = vpop.xlane.xlu0 %385
    %v387 = vsub.f32 %v378, %v383
    %v388 = vsub.f32 %v379, %v386
    %v389 = vmul.f32 %v387, 1.442695
    %v390 = vpow.pop %v389
    %v391 = vmul.f32 %v388, 1.442695
    %v392 = vpow.pop %v391
    %v393 = vsel %vm380, %v390, 0.0
    %394 = vadd.xlane.f32.xlu0 %v393
    %v395 = vpop.xlane.xlu0 %394
    %v396 = vsel %vm380, %v392, 0.0
    %397 = vadd.xlane.f32.xlu0 %v396
    %v398 = vpop.xlane.xlu0 %397
    %v399 = vrcp.pop %v395
    %v400 = vrcp.pop %v398
    %v401 = vmul.f32 %v395, %v399
    %v402 = vmul.f32 %v398, %v400
    %v403 = vsub.f32 2.0, %v401
    %v404 = vsub.f32 2.0, %v402
    %v405 = vmul.f32 %v399, %v403
    %v406 = vmul.f32 %v400, %v404
    %v407 = vmul.f32 %v390, %v405
    %v408 = vmul.f32 %v392, %v406
    %v410 = vsel %vm380, %v407, 0
    %412 = vmatprep.subr.mxu0 0.0
    %413 = vmatpush1.msra.mxu0 0.0
    %414 = vmatprep.subr.mxu0 0.0
    %415 = vmatpush1.msra.mxu0 0.0
    %416 = vmatprep.subr.mxu0 0.0
    %417 = vmatpush1.msra.mxu0 0.0
    %418 = vmatprep.subr.mxu0 0.0
    %419 = vmatpush1.msra.mxu0 0.0
    %420 = vmatprep.subr.mxu0 0.0
    %421 = vmatpush1.msra.mxu0 0.0
    %422 = vmatprep.subr.mxu0 0.0
    %423 = vmatpush1.msra.mxu0 0.0
    %424 = vmatprep.subr.mxu0 0.0
    %425 = vmatpush1.msra.mxu0 0.0
    %426 = vmatprep.subr.mxu0 0.0
    %427 = vmatpush1.msra.mxu0 0.0
    %428 = vmatprep.subr.mxu0 0.0
    %429 = vmatpush1.msra.mxu0 0.0
    %430 = vmatprep.subr.mxu0 0.0
    %431 = vmatpush1.msra.mxu0 0.0
    %432 = vmatprep.subr.mxu0 0.0
    %433 = vmatpush1.msra.mxu0 0.0
    %434 = vmatprep.subr.mxu0 0.0
    %435 = vmatpush1.msra.mxu0 0.0
    %436 = vmatprep.subr.mxu0 0.0
    %437 = vmatpush1.msra.mxu0 0.0
    %438 = vmatprep.subr.mxu0 0.0
    %439 = vmatpush1.msra.mxu0 0.0
    %440 = vmatprep.subr.mxu0 0.0
    %441 = vmatpush1.msra.mxu0 0.0
    %442 = vmatprep.subr.mxu0 0.0
    %443 = vmatpush1.msra.mxu0 %v232
    %444 = vmatprep.subr.mxu0 0.0
    %445 = vmatpush2.msra.mxu0 0.0
    %446 = vmatprep.subr.mxu0 0.0
    %447 = vmatpush2.msra.mxu0 0.0
    %448 = vmatprep.subr.mxu0 0.0
    %449 = vmatpush2.msra.mxu0 0.0
    %450 = vmatprep.subr.mxu0 0.0
    %451 = vmatpush2.msra.mxu0 0.0
    %452 = vmatprep.subr.mxu0 0.0
    %453 = vmatpush2.msra.mxu0 0.0
    %454 = vmatprep.subr.mxu0 0.0
    %455 = vmatpush2.msra.mxu0 0.0
    %456 = vmatprep.subr.mxu0 0.0
    %457 = vmatpush2.msra.mxu0 0.0
    %458 = vmatprep.subr.mxu0 0.0
    %459 = vmatpush2.msra.mxu0 0.0
    %460 = vmatprep.subr.mxu0 0.0
    %461 = vmatpush2.msra.mxu0 0.0
    %462 = vmatprep.subr.mxu0 0.0
    %463 = vmatpush2.msra.mxu0 0.0
    %464 = vmatprep.subr.mxu0 0.0
    %465 = vmatpush2.msra.mxu0 0.0
    %466 = vmatprep.subr.mxu0 0.0
    %467 = vmatpush2.msra.mxu0 0.0
    %468 = vmatprep.subr.mxu0 0.0
    %469 = vmatpush2.msra.mxu0 0.0
    %470 = vmatprep.subr.mxu0 0.0
    %471 = vmatpush2.msra.mxu0 0.0
    %472 = vmatprep.subr.mxu0 0.0
    %473 = vmatpush2.msra.mxu0 0.0
    %474 = vmatprep.subr.mxu0 0.0
    %475 = vmatpush2.msra.mxu0 0.0
    %476 = vmatprep.mubr.f32.mxu0 0.0
    %477 = vmatmul.mubr.f32.gmra.mxu0 %v410
    %v478 = vpop.f32.mrf.mxu0
    %v479 = vadd.f32 0.0, %v478
    %v480 = vpop.f32.mrf.mxu0
    %481 = vdwg.mxu0
    %v483 = vsel %vm380, %v408, 0
    %485 = vmatprep.subr.mxu0 0.0
    %486 = vmatpush1.msra.mxu0 0.0
    %487 = vmatprep.subr.mxu0 0.0
    %488 = vmatpush1.msra.mxu0 0.0
    %489 = vmatprep.subr.mxu0 0.0
    %490 = vmatpush1.msra.mxu0 0.0
    %491 = vmatprep.subr.mxu0 0.0
    %492 = vmatpush1.msra.mxu0 0.0
    %493 = vmatprep.subr.mxu0 0.0
    %494 = vmatpush1.msra.mxu0 0.0
    %495 = vmatprep.subr.mxu0 0.0
    %496 = vmatpush1.msra.mxu0 0.0
    %497 = vmatprep.subr.mxu0 0.0
    %498 = vmatpush1.msra.mxu0 0.0
    %499 = vmatprep.subr.mxu0 0.0
    %500 = vmatpush1.msra.mxu0 0.0
    %501 = vmatprep.subr.mxu0 0.0
    %502 = vmatpush1.msra.mxu0 0.0
    %503 = vmatprep.subr.mxu0 0.0
    %504 = vmatpush1.msra.mxu0 0.0
    %505 = vmatprep.subr.mxu0 0.0
    %506 = vmatpush1.msra.mxu0 0.0
    %507 = vmatprep.subr.mxu0 0.0
    %508 = vmatpush1.msra.mxu0 0.0
    %509 = vmatprep.subr.mxu0 0.0
    %510 = vmatpush1.msra.mxu0 0.0
    %511 = vmatprep.subr.mxu0 0.0
    %512 = vmatpush1.msra.mxu0 0.0
    %513 = vmatprep.subr.mxu0 0.0
    %514 = vmatpush1.msra.mxu0 0.0
    %515 = vmatprep.subr.mxu0 0.0
    %516 = vmatpush1.msra.mxu0 %v233
    %517 = vmatprep.subr.mxu0 0.0
    %518 = vmatpush2.msra.mxu0 0.0
    %519 = vmatprep.subr.mxu0 0.0
    %520 = vmatpush2.msra.mxu0 0.0
    %521 = vmatprep.subr.mxu0 0.0
    %522 = vmatpush2.msra.mxu0 0.0
    %523 = vmatprep.subr.mxu0 0.0
    %524 = vmatpush2.msra.mxu0 0.0
    %525 = vmatprep.subr.mxu0 0.0
    %526 = vmatpush2.msra.mxu0 0.0
    %527 = vmatprep.subr.mxu0 0.0
    %528 = vmatpush2.msra.mxu0 0.0
    %529 = vmatprep.subr.mxu0 0.0
    %530 = vmatpush2.msra.mxu0 0.0
    %531 = vmatprep.subr.mxu0 0.0
    %532 = vmatpush2.msra.mxu0 0.0
    %533 = vmatprep.subr.mxu0 0.0
    %534 = vmatpush2.msra.mxu0 0.0
    %535 = vmatprep.subr.mxu0 0.0
    %536 = vmatpush2.msra.mxu0 0.0
    %537 = vmatprep.subr.mxu0 0.0
    %538 = vmatpush2.msra.mxu0 0.0
    %539 = vmatprep.subr.mxu0 0.0
    %540 = vmatpush2.msra.mxu0 0.0
    %541 = vmatprep.subr.mxu0 0.0
    %542 = vmatpush2.msra.mxu0 0.0
    %543 = vmatprep.subr.mxu0 0.0
    %544 = vmatpush2.msra.mxu0 0.0
    %545 = vmatprep.subr.mxu0 0.0
    %546 = vmatpush2.msra.mxu0 0.0
    %547 = vmatprep.subr.mxu0 0.0
    %548 = vmatpush2.msra.mxu0 0.0
    %549 = vmatprep.mubr.f32.mxu0 0.0
    %550 = vmatmul.mubr.f32.gmra.mxu0 %v483
    %v551 = vpop.f32.mrf.mxu0
    %v552 = vadd.f32 0.0, %v551
    %v553 = vpop.f32.mrf.mxu0
    %554 = vdwg.mxu0
    %vm555 = vcmp.gt.f32.partialorder %v383, -1e+20
    %vm556 = vcmp.gt.f32.partialorder %v386, -1e+20
    %v557 = vsel %vm555, 1, 0
    %v558 = vsel %vm556, 1, 0
    %vm559 = vcmp.eq.s32.totalorder %v557, 1
    %vm560 = vcmp.eq.s32.totalorder %v558, 1
    %v561 = vsel %vm559, %v479, 0.0
    %v562 = vsel %vm560, %v552, 0.0
    %v563 = vld [vmem:[%s3] sm:$0x1]
    %v565 = vlaneseq
    %v566 = vshrl.u32 %v565, 7
    %v567 = vsub.s32 0, %v566
    %v568 = vrot.slane %v563, %v567
    %v570 = vadd.f32 %v561, %v568
    %v571 = vadd.f32 %v562, %v568
    %v575 = vunpack.c.l.s4 1983009808
    %v576 = vunpack.c.0.s8 %v575
    %v577 = vlaneseq
    %v578 = vshrl.u32 %v577, 7
    %v579 = vsub.s32 %v576, %v578
    %v580 = vrot.slane %v570, %v579
    %v582 = vunpack.c.l.s4 1983009808
    %v583 = vunpack.c.0.s8 %v582
    %v584 = vlaneseq
    %v585 = vshrl.u32 %v584, 7
    %v586 = vsub.s32 %v583, %v585
    %v587 = vrot.slane %v571, %v586
    %vm588 = vcmask 1044484
    %v589 = vsel %vm588, %v580, %v580
    %vm590 = vcmask 1046534
    %v591 = vsel %vm590, %v580, %v589
    %v592 = vrot.slane %v587, 7
    %vm593 = vcmask 1041409
    %v594 = vsel %vm593, %v592, %v591
    %vm595 = vcmask 1043459
    %v596 = vsel %vm595, %v592, %v594
    %vm597 = vcmask 1045509
    %v598 = vsel %vm597, %v592, %v596
    %vm599 = vcmask 1047559
    %v600 = vsel %vm599, %v592, %v598
    %vm602 = vcmask 254976
    %603 = vst.msk [vmem:[#allocation8] sm:$0x3] %vm602, %v600
    %v604 = vrot.slane %v580, 1
    %v605 = vsel %vm588, %v604, %v604
    %v606 = vsel %vm590, %v604, %v605
    %v607 = vsel %vm593, %v587, %v606
    %v608 = vsel %vm595, %v587, %v607
    %v609 = vsel %vm597, %v587, %v608
    %v610 = vsel %vm599, %v587, %v609
    %611 = vrot.lane.b32.xlu0 %v610, 32
    %v612 = vpop.permute.xlu0 %611
    %vm614 = vcmask 517376
    %615 = vst.msk [vmem:[#allocation8] sm:$0x3] %vm614, %v612
    %v616 = vcombine.high %v580, %v580
    %v617 = vcombine.high %v587, %v587
    %v618 = vsel %vm588, %v616, %v616
    %v619 = vsel %vm590, %v616, %v618
    %v620 = vrot.slane %v617, 7
    %v621 = vsel %vm593, %v620, %v619
    %v622 = vsel %vm595, %v620, %v621
    %v623 = vsel %vm597, %v620, %v622
    %v624 = vsel %vm599, %v620, %v623
    %625 = vrot.lane.b32.xlu0 %v624, 64
    %v626 = vpop.permute.xlu0 %625
    %vm628 = vcmask 779776
    %629 = vst.msk [vmem:[#allocation8] sm:$0x3] %vm628, %v626
    %v630 = vrot.slane %v616, 1
    %v631 = vsel %vm588, %v630, %v630
    %v632 = vsel %vm590, %v630, %v631
    %v633 = vsel %vm593, %v617, %v632
    %v634 = vsel %vm595, %v617, %v633
    %v635 = vsel %vm597, %v617, %v634
    %v636 = vsel %vm599, %v617, %v635
    %637 = vrot.lane.b32.xlu0 %v636, 96
    %v638 = vpop.permute.xlu0 %637
    %vm640 = vcmask 1042176
    %641 = vst.msk [vmem:[#allocation8] sm:$0x3] %vm640, %v638
    %v642 = vcombine.high %v570, %v570
    %v644 = vunpack.c.l.s4 1983009808
    %v645 = vunpack.c.0.s8 %v644
    %v646 = vlaneseq
    %v647 = vshrl.u32 %v646, 7
    %v648 = vsub.s32 %v645, %v647
    %v649 = vrot.slane %v642, %v648
    %v650 = vcombine.high %v571, %v571
    %v652 = vunpack.c.l.s4 1983009808
    %v653 = vunpack.c.0.s8 %v652
    %v654 = vlaneseq
    %v655 = vshrl.u32 %v654, 7
    %v656 = vsub.s32 %v653, %v655
    %v657 = vrot.slane %v650, %v656
    %v658 = vsel %vm588, %v649, %v649
    %v659 = vsel %vm590, %v649, %v658
    %v660 = vrot.slane %v657, 7
    %v661 = vsel %vm593, %v660, %v659
    %v662 = vsel %vm595, %v660, %v661
    %v663 = vsel %vm597, %v660, %v662
    %v664 = vsel %vm599, %v660, %v663
    %666 = vst.msk [vmem:[#allocation8 + $0x2] sm:$0x3] %vm602, %v664
    %v667 = vrot.slane %v649, 1
    %v668 = vsel %vm588, %v667, %v667
    %v669 = vsel %vm590, %v667, %v668
    %v670 = vsel %vm593, %v657, %v669
    %v671 = vsel %vm595, %v657, %v670
    %v672 = vsel %vm597, %v657, %v671
    %v673 = vsel %vm599, %v657, %v672
    %674 = vrot.lane.b32.xlu0 %v673, 32
    %v675 = vpop.permute.xlu0 %674
    %677 = vst.msk [vmem:[#allocation8 + $0x2] sm:$0x3] %vm614, %v675
    %v678 = vcombine.high %v649, %v649
    %v679 = vcombine.high %v657, %v657
    %v680 = vsel %vm588, %v678, %v678
    %v681 = vsel %vm590, %v678, %v680
    %v682 = vrot.slane %v679, 7
    %v683 = vsel %vm593, %v682, %v681
    %v684 = vsel %vm595, %v682, %v683
    %v685 = vsel %vm597, %v682, %v684
    %v686 = vsel %vm599, %v682, %v685
    %687 = vrot.lane.b32.xlu0 %v686, 64
    %v688 = vpop.permute.xlu0 %687
    %690 = vst.msk [vmem:[#allocation8 + $0x2] sm:$0x3] %vm628, %v688
    %v691 = vrot.slane %v678, 1
    %v692 = vsel %vm588, %v691, %v691
    %v693 = vsel %vm590, %v691, %v692
    %v694 = vsel %vm593, %v679, %v693
    %v695 = vsel %vm595, %v679, %v694
    %v696 = vsel %vm597, %v679, %v695
    %v697 = vsel %vm599, %v679, %v696
    %698 = vrot.lane.b32.xlu0 %v697, 96
    %v699 = vpop.permute.xlu0 %698
    %701 = vst.msk [vmem:[#allocation8 + $0x2] sm:$0x3] %vm640, %v699
    // Predicated region
    $region30: #{tpu_custom_call.1} parent=1 // pred_check
      _
    $region31: #{tpu_custom_call.1} parent=1 // pred_check_branch
      %703 = sbr.rel (0) target = $region33
    $region32: #{tpu_custom_call.1} parent=1 // pred_region
      %s705 = ssub.s32 64, 64
      %706 = vsyncadd [#allocation4], %s705
      %s708 = sshll.u32 [#allocation8], 4
      %s709 = int_to_ptr.vmem [resolvable:$true] %s708
      %711 = dma.vmem_to_hbm [thread:$0]  %s709, 64, %s4, [#allocation4]
    $region33: #{tpu_custom_call.1} parent=1 // pred_fallthru
      _
    // Predicated region
    $region34: #{tpu_custom_call.1} parent=1 // pred_check
      _
    $region35: #{tpu_custom_call.1} parent=1 // pred_check_branch
      %713 = sbr.rel (0) target = $region37
    $region36: #{tpu_custom_call.1} parent=1 // pred_region
      %714 = dma.done [#allocation4], 64
    $region37: #{tpu_custom_call.1} parent=1 // pred_fallthru
      _
    %715 = vsyncpa [#allocation3], 1
    %716 = vsyncpa [#allocation6], 1
    %717 = vsyncpa [#allocation4], 1

</llo_original>
